<compile_context>
chip_gen: v5e
topology: v5e:2x2
jax: 0.10.0
libtpu: 0.0.40
codegen_flags: <defaults>
</compile_context>

<pallas_src>
import functools

import jax
import jax.numpy as jnp
from jax.experimental import pallas as pl
from jax.experimental.pallas import tpu as pltpu

EPS = 1e-3


def _round_up(x, m):
    return (x + m - 1) // m * m


def _bn_fused_kernel(x_ref, w_ref, b_ref, o_ref, *, inv_count):
    """Single-block fused stats+apply. x_ref/o_ref: (R, C); w_ref/b_ref: (1, C)."""
    x = x_ref[...].astype(jnp.float32)
    mean = jnp.sum(x, axis=0, keepdims=True) * jnp.float32(inv_count)      # (1, C)
    xc = x - mean
    var = jnp.sum(xc * xc, axis=0, keepdims=True) * jnp.float32(inv_count)  # centered (accurate)
    inv_std = jax.lax.rsqrt(var + jnp.float32(EPS))                         # EUP slot
    scale = w_ref[...].astype(jnp.float32) * inv_std                        # (1, C)
    shift = b_ref[...].astype(jnp.float32) - mean * scale
    # Re-read x from VMEM for the apply (vector-load slots are cheap; keeps
    # the big block from being held live across the cross-sublane reductions).
    o_ref[...] = (x_ref[...].astype(jnp.float32) * scale + shift).astype(o_ref.dtype)


def _bn_stats_kernel(x_ref, w_ref, b_ref, scale_ref, shift_ref,
                     sum_ref, ssq_ref, *, inv_count, total_rows, row_tile):
    """Row-tiled stats accumulation; finalizes per-channel scale/shift."""
    r = pl.program_id(0)

    @pl.when(r == 0)
    def _():
        sum_ref[...] = jnp.zeros_like(sum_ref)
        ssq_ref[...] = jnp.zeros_like(ssq_ref)

    x = x_ref[...].astype(jnp.float32)
    if total_rows % row_tile != 0:
        # Mask rows past the end of the array on the last (partial) row tile so
        # the reduction only covers real data (inv_count stays exact).
        row_idx = jax.lax.broadcasted_iota(jnp.int32, x.shape, 0) + r * row_tile
        x = jnp.where(row_idx < total_rows, x, 0.0)
    sum_ref[...] += jnp.sum(x, axis=0, keepdims=True)
    ssq_ref[...] += jnp.sum(x * x, axis=0, keepdims=True)

    @pl.when(r == pl.num_programs(0) - 1)
    def _():
        mean = sum_ref[...] * jnp.float32(inv_count)
        var = jnp.maximum(ssq_ref[...] * jnp.float32(inv_count) - mean * mean, 0.0)
        inv_std = jax.lax.rsqrt(var + jnp.float32(EPS))
        scale = w_ref[...].astype(jnp.float32) * inv_std
        scale_ref[...] = scale
        shift_ref[...] = b_ref[...].astype(jnp.float32) - mean * scale


def _bn_apply_kernel(x_ref, scale_ref, shift_ref, o_ref):
    o_ref[...] = (x_ref[...].astype(jnp.float32) * scale_ref[...]
                  + shift_ref[...]).astype(o_ref.dtype)


def _per_block_vmem_budget_bytes():
    # Per-block budget such that ~4 resident buffers (double-buffered in + out,
    # lane-padded) stay well inside every generation's scoped VMEM:
    # v5e 16 MiB scoped default, v6e 32 MiB, v7x 64 MiB physical.
    try:
        cap = int(pltpu.get_tpu_info().vmem_capacity_bytes)
    except Exception:  # pragma: no cover - conservative fallback
        cap = 64 * 1024 * 1024
    return max(512 * 1024, min(2 * 1024 * 1024, cap // 32))


def batchnorm2d_pallas(x_nchw, weight, bias):
    N, C, H, W = x_nchw.shape
    R = N * H * W

    # Lane-dense layout: channels on the lane axis, reduction over sublanes.
    # One-time NHWC transpose in the wrapper is cheap relative to the win.
    x2 = jnp.transpose(x_nchw, (0, 2, 3, 1)).reshape(R, C)
    w2 = weight.reshape(1, C).astype(jnp.float32)
    b2 = bias.reshape(1, C).astype(jnp.float32)

    inv_count = 1.0 / float(R)

    c_pad = _round_up(C, 128)          # lane padding
    r_pad = _round_up(R, 8)            # sublane padding
    bytes_per_row = c_pad * 4          # padded f32 VMEM footprint per row
    budget = _per_block_vmem_budget_bytes()

    if r_pad * bytes_per_row <= budget:
        # Whole activation fits in a single comfortably-sized block: fuse
        # stats + apply in one pallas_call (the module's (1,304,7,7) case).
        out2 = pl.pallas_call(
            functools.partial(_bn_fused_kernel, inv_count=inv_count),
            out_shape=jax.ShapeDtypeStruct((R, C), x_nchw.dtype),
            grid=(1,),
            in_specs=[
                pl.BlockSpec((R, C), lambda i: (0, 0)),
                pl.BlockSpec((1, C), lambda i: (0, 0)),
                pl.BlockSpec((1, C), lambda i: (0, 0)),
            ],
            out_specs=pl.BlockSpec((R, C), lambda i: (0, 0)),
            compiler_params=pltpu.CompilerParams(
                dimension_semantics=("arbitrary",)),
        )(x2, w2, b2)
    else:
        # Large activation: row-tiled two-pass (stats accumulation, then a
        # row-parallel apply that megacore-shards on v7x).
        rt = (budget // bytes_per_row) // 8 * 8
        rt = max(8, min(rt, r_pad))
        num_r = pl.cdiv(R, rt)

        scale, shift = pl.pallas_call(
            functools.partial(_bn_stats_kernel, inv_count=inv_count,
                              total_rows=R, row_tile=rt),
            out_shape=(jax.ShapeDtypeStruct((1, C), jnp.float32),
                       jax.ShapeDtypeStruct((1, C), jnp.float32)),
            grid=(num_r,),
            in_specs=[
                pl.BlockSpec((rt, C), lambda r: (r, 0)),
                pl.BlockSpec((1, C), lambda r: (0, 0)),   # weight: untiled
                pl.BlockSpec((1, C), lambda r: (0, 0)),   # bias: untiled
            ],
            out_specs=(pl.BlockSpec((1, C), lambda r: (0, 0)),
                       pl.BlockSpec((1, C), lambda r: (0, 0))),
            scratch_shapes=[pltpu.VMEM((1, C), jnp.float32),
                            pltpu.VMEM((1, C), jnp.float32)],
            compiler_params=pltpu.CompilerParams(
                dimension_semantics=("arbitrary",)),
        )(x2, w2, b2)

        out2 = pl.pallas_call(
            _bn_apply_kernel,
            out_shape=jax.ShapeDtypeStruct((R, C), x_nchw.dtype),
            grid=(num_r,),
            in_specs=[
                pl.BlockSpec((rt, C), lambda r: (r, 0)),
                pl.BlockSpec((1, C), lambda r: (0, 0)),
                pl.BlockSpec((1, C), lambda r: (0, 0)),
            ],
            out_specs=pl.BlockSpec((rt, C), lambda r: (r, 0)),
            compiler_params=pltpu.CompilerParams(
                dimension_semantics=("parallel",)),
        )(x2, scale, shift)

    return out2.reshape(N, H, W, C).transpose(0, 3, 1, 2)


def batchnorm2d_ref(x_nchw, weight, bias):
    x = x_nchw.astype(jnp.float32)
    mean = jnp.mean(x, axis=(0, 2, 3), keepdims=True)
    var = jnp.mean(jnp.square(x - mean), axis=(0, 2, 3), keepdims=True)
    w = weight.reshape(1, -1, 1, 1).astype(jnp.float32)
    b = bias.reshape(1, -1, 1, 1).astype(jnp.float32)
    y = (x - mean) * jax.lax.rsqrt(var + EPS) * w + b
    return y.astype(x_nchw.dtype)


if __name__ == "__main__":
    # Module shape: BatchNorm2d(304) applied to [1, 304, 7, 7] (fused path).
    x = jax.random.normal(jax.random.PRNGKey(0), (1, 304, 7, 7), dtype=jnp.float32)
    weight = jnp.ones((304,), dtype=jnp.float32)   # nn.BatchNorm2d default init
    bias = jnp.zeros((304,), dtype=jnp.float32)

    out = jax.block_until_ready(batchnorm2d_pallas(x, weight, bias))
    ref = batchnorm2d_ref(x, weight, bias)
    assert out.shape == (1, 304, 7, 7)
    assert jnp.allclose(out, ref, atol=1e-4, rtol=1e-4), \
        float(jnp.max(jnp.abs(out - ref)))

    # Larger activation with the same 304-channel BN: exercises the row-tiled
    # two-pass path (including the masked partial last row tile).
    k1, k2, k3 = jax.random.split(jax.random.PRNGKey(1), 3)
    xb = jax.random.normal(k1, (2, 304, 32, 32), dtype=jnp.float32)
    wb = jax.random.normal(k2, (304,), dtype=jnp.float32) * 0.1 + 1.0
    bb = jax.random.normal(k3, (304,), dtype=jnp.float32) * 0.1
    outb = jax.block_until_ready(batchnorm2d_pallas(xb, wb, bb))
    refb = batchnorm2d_ref(xb, wb, bb)
    assert jnp.allclose(outb, refb, atol=1e-3, rtol=1e-3), \
        float(jnp.max(jnp.abs(outb - refb)))

    print("KERNEL_OK")
</pallas_src>

<mosaic_0001>
module attributes {stable_mosaic.version = 11 : i64} {
  func.func @_bn_fused_kernel(%arg0: i32, %arg1: memref<49x304xf32, #tpu.memory_space<vmem>>, %arg2: memref<1x304xf32, #tpu.memory_space<vmem>>, %arg3: memref<1x304xf32, #tpu.memory_space<vmem>>, %arg4: memref<49x304xf32, #tpu.memory_space<vmem>>) attributes {dimension_semantics = [#tpu.dimension_semantics<arbitrary>], iteration_bounds = array<i64: 1>, scalar_prefetch = 0 : i64, scratch_operands = 0 : i64, tpu.core_type = #tpu.core_type<tc>, window_params = [{pipeline_mode = #tpu.pipeline_mode<synchronous>, transform_indices = @transform_0, window_bounds = array<i64: 49, 304>}, {pipeline_mode = #tpu.pipeline_mode<synchronous>, transform_indices = @transform_1, window_bounds = array<i64: 1, 304>}, {pipeline_mode = #tpu.pipeline_mode<synchronous>, transform_indices = @transform_2, window_bounds = array<i64: 1, 304>}, {pipeline_mode = #tpu.pipeline_mode<synchronous>, transform_indices = @transform_3, window_bounds = array<i64: 49, 304>}]} {
    %c0 = arith.constant 0 : index
    %c0_0 = arith.constant 0 : index
    %0 = vector.load %arg1[%c0, %c0_0] : memref<49x304xf32, #tpu.memory_space<vmem>>, vector<49x304xf32>
    %cst = arith.constant dense<0.000000e+00> : vector<304xf32>
    %1 = vector.multi_reduction <add>, %0, %cst [0] : vector<49x304xf32> to vector<304xf32>
    %2 = vector.shape_cast %1 : vector<304xf32> to vector<1x304xf32>
    %cst_1 = arith.constant 0.0204081628 : f32
    %3 = vector.broadcast %cst_1 : f32 to vector<1x304xf32>
    %4 = arith.mulf %2, %3 : vector<1x304xf32>
    %5 = vector.broadcast %4 : vector<1x304xf32> to vector<49x304xf32>
    %6 = arith.subf %0, %5 : vector<49x304xf32>
    %7 = arith.mulf %6, %6 : vector<49x304xf32>
    %cst_2 = arith.constant dense<0.000000e+00> : vector<304xf32>
    %8 = vector.multi_reduction <add>, %7, %cst_2 [0] : vector<49x304xf32> to vector<304xf32>
    %9 = vector.shape_cast %8 : vector<304xf32> to vector<1x304xf32>
    %cst_3 = arith.constant 0.0204081628 : f32
    %10 = vector.broadcast %cst_3 : f32 to vector<1x304xf32>
    %11 = arith.mulf %9, %10 : vector<1x304xf32>
    %cst_4 = arith.constant 1.000000e-03 : f32
    %12 = vector.broadcast %cst_4 : f32 to vector<1x304xf32>
    %13 = arith.addf %11, %12 : vector<1x304xf32>
    %14 = math.rsqrt %13 : vector<1x304xf32>
    %c0_5 = arith.constant 0 : index
    %c0_6 = arith.constant 0 : index
    %15 = vector.load %arg2[%c0_5, %c0_6] : memref<1x304xf32, #tpu.memory_space<vmem>>, vector<1x304xf32>
    %16 = arith.mulf %15, %14 : vector<1x304xf32>
    %c0_7 = arith.constant 0 : index
    %c0_8 = arith.constant 0 : index
    %17 = vector.load %arg3[%c0_7, %c0_8] : memref<1x304xf32, #tpu.memory_space<vmem>>, vector<1x304xf32>
    %18 = arith.mulf %4, %16 : vector<1x304xf32>
    %19 = arith.subf %17, %18 : vector<1x304xf32>
    %c0_9 = arith.constant 0 : index
    %c0_10 = arith.constant 0 : index
    %20 = vector.load %arg1[%c0_9, %c0_10] : memref<49x304xf32, #tpu.memory_space<vmem>>, vector<49x304xf32>
    %21 = vector.broadcast %16 : vector<1x304xf32> to vector<49x304xf32>
    %22 = arith.mulf %20, %21 : vector<49x304xf32>
    %23 = vector.broadcast %19 : vector<1x304xf32> to vector<49x304xf32>
    %24 = arith.addf %22, %23 : vector<49x304xf32>
    %c0_11 = arith.constant 0 : index
    %c0_12 = arith.constant 0 : index
    %25 = vector.load %arg4[%c0_11, %c0_12] : memref<49x304xf32, #tpu.memory_space<vmem>>, vector<49x304xf32>
    tpu.vector_store %arg4[%c0_11, %c0_12], %24 {strides = array<i32>} : memref<49x304xf32, #tpu.memory_space<vmem>>, vector<49x304xf32>,
    return
  }
  func.func @transform_0(%arg0: i32) -> (i32, i32) {
    %c0_i32 = arith.constant 0 : i32
    %c0_i32_0 = arith.constant 0 : i32
    %c0_i32_1 = arith.constant 0 : i32
    return %c0_i32, %c0_i32_0 : i32, i32
  }
  func.func @transform_1(%arg0: i32) -> (i32, i32) {
    %c0_i32 = arith.constant 0 : i32
    %c0_i32_0 = arith.constant 0 : i32
    %c0_i32_1 = arith.constant 0 : i32
    return %c0_i32, %c0_i32_0 : i32, i32
  }
  func.func @transform_2(%arg0: i32) -> (i32, i32) {
    %c0_i32 = arith.constant 0 : i32
    %c0_i32_0 = arith.constant 0 : i32
    %c0_i32_1 = arith.constant 0 : i32
    return %c0_i32, %c0_i32_0 : i32, i32
  }
  func.func @transform_3(%arg0: i32) -> (i32, i32) {
    %c0_i32 = arith.constant 0 : i32
    %c0_i32_0 = arith.constant 0 : i32
    %c0_i32_1 = arith.constant 0 : i32
    return %c0_i32, %c0_i32_0 : i32, i32
  }
}

</mosaic_0001>

<llo_original>
// kernel: tpu_custom_call.1
$region0: #{tpu_custom_call.1}
  #allocation0 [shape = 'u32[]', space=smem, size = 0x4, offset = 0x4, fixed_abs, tag = 'smem constant byte address 0x4 - core index']
  #allocation1 [shape = 'u32[72,128]{1,0:T(1,128)}', space=vmem, size = 0x9000, scoped, tag = 'internal scratch']
  %s0 = inlined_call_operand.hbm [shape: f32[49,304], index: 0, kind: input, shape index: {}]
  %s1 = inlined_call_operand.hbm [shape: f32[1,304], index: 1, kind: input, shape index: {}]
  %s2 = inlined_call_operand.hbm [shape: f32[1,304], index: 2, kind: input, shape index: {}]
  %s3 = inlined_call_operand.hbm [shape: f32[49,304], index: 3, kind: output, shape index: {}]
  %s4 = sld [smem:[#allocation0]]
  $region34: #{tpu_custom_call.1} parent=0
    _
  %s6 = ssub.s32 1, %s4
  %s7 = scalar_select 0, %s6, %s4
  $region1: #{tpu_custom_call.1} parent=0
    #allocation2 [shape = 'u8[86016]{0}', space=vmem, size = 0x15000, scoped, tag = 'input window, operand 0, single buffered']
    #allocation3 [shape = 's32[1]{0}', space=sflag, size = 0x4, scoped, tag = 'scoped memory for tpu_custom_call.1']
    #allocation4 [shape = 's32[1]{0}', space=sflag, size = 0x4, scoped, tag = 'scoped memory for tpu_custom_call.1']
    #allocation5 [shape = 'u8[1536]{0}', space=vmem, size = 0x800, scoped, tag = 'input window, operand 1, single buffered']
    #allocation6 [shape = 's32[1]{0}', space=sflag, size = 0x4, scoped, tag = 'scoped memory for tpu_custom_call.1']
    #allocation7 [shape = 'u8[1536]{0}', space=vmem, size = 0x800, scoped, tag = 'input window, operand 2, single buffered']
    #allocation8 [shape = 'u8[86016]{0}', space=vmem, size = 0x15000, scoped, tag = 'output window, operand 0, single buffered']
    %8 = vsyncpa [#allocation3], 0
    %9 = vsyncpa [#allocation6], 0
    %10 = vsyncpa [#allocation4], 0
    // Predicated region
    $region2: #{tpu_custom_call.1} parent=1 // pred_check
      _
    $region3: #{tpu_custom_call.1} parent=1 // pred_check_branch
      %12 = sbr.rel (0) target = $region5
    $region4: #{tpu_custom_call.1} parent=1 // pred_region
      %14 = vsyncadd [#allocation3], 0
      %s15 = sshll.u32 %s0, 4
      %s16 = int_to_ptr.hbm [resolvable:$true] %s15
      %s17 = sshll.u32 [#allocation2], 4
      %s18 = int_to_ptr.vmem [resolvable:$true] %s17
      %23 = dma.hbm_to_vmem [thread:$0]  %s16, 2688, %s18, [#allocation3], 384, 384, 24
    $region5: #{tpu_custom_call.1} parent=1 // pred_fallthru
      _
    // Predicated region
    $region6: #{tpu_custom_call.1} parent=1 // pred_check
      _
    $region7: #{tpu_custom_call.1} parent=1 // pred_check_branch
      %25 = sbr.rel (0) target = $region9
    $region8: #{tpu_custom_call.1} parent=1 // pred_region
      %27 = vsyncadd [#allocation6], 0
      %s29 = sshll.u32 %s1, 4
      %s30 = int_to_ptr.hbm [resolvable:$true] %s29
      %s31 = sshll.u32 [#allocation5], 4
      %s32 = int_to_ptr.vmem [resolvable:$true] %s31
      %34 = dma.hbm_to_vmem [thread:$0]  %s30, 48, %s32, [#allocation6]
    $region9: #{tpu_custom_call.1} parent=1 // pred_fallthru
      _
    // Predicated region
    $region10: #{tpu_custom_call.1} parent=1 // pred_check
      _
    $region11: #{tpu_custom_call.1} parent=1 // pred_check_branch
      %36 = sbr.rel (0) target = $region13
    $region12: #{tpu_custom_call.1} parent=1 // pred_region
      %38 = vsyncadd [#allocation6], 0
      %s40 = sshll.u32 %s2, 4
      %s41 = int_to_ptr.hbm [resolvable:$true] %s40
      %s42 = sshll.u32 [#allocation7], 4
      %s43 = int_to_ptr.vmem [resolvable:$true] %s42
      %45 = dma.hbm_to_vmem [thread:$0]  %s41, 48, %s43, [#allocation6]
    $region13: #{tpu_custom_call.1} parent=1 // pred_fallthru
      _
    // Predicated region
    $region14: #{tpu_custom_call.1} parent=1 // pred_check
      _
    $region15: #{tpu_custom_call.1} parent=1 // pred_check_branch
      %47 = sbr.rel (0) target = $region17
    $region16: #{tpu_custom_call.1} parent=1 // pred_region
      %49 = dma.done [#allocation3], 2688
    $region17: #{tpu_custom_call.1} parent=1 // pred_fallthru
      _
    // Predicated region
    $region18: #{tpu_custom_call.1} parent=1 // pred_check
      _
    $region19: #{tpu_custom_call.1} parent=1 // pred_check_branch
      %51 = sbr.rel (0) target = $region21
    $region20: #{tpu_custom_call.1} parent=1 // pred_region
      %53 = dma.done [#allocation6], 48
    $region21: #{tpu_custom_call.1} parent=1 // pred_fallthru
      _
    // Predicated region
    $region22: #{tpu_custom_call.1} parent=1 // pred_check
      _
    $region23: #{tpu_custom_call.1} parent=1 // pred_check_branch
      %55 = sbr.rel (0) target = $region25
    $region24: #{tpu_custom_call.1} parent=1 // pred_region
      %57 = dma.done [#allocation6], 48
    $region25: #{tpu_custom_call.1} parent=1 // pred_fallthru
      _
    %v58 = vld [vmem:[#allocation2] sm:$0xff]
    %v59 = vld [vmem:[#allocation2 + $0x8] sm:$0xff]
    %v60 = vld [vmem:[#allocation2 + $0x10] sm:$0xff]
    %v61 = vld [vmem:[#allocation2 + $0x18] sm:$0xff]
    %v62 = vld [vmem:[#allocation2 + $0x20] sm:$0xff]
    %v63 = vld [vmem:[#allocation2 + $0x28] sm:$0xff]
    %v64 = vld [vmem:[#allocation2 + $0x30] sm:$0xff]
    %v65 = vld [vmem:[#allocation2 + $0x38] sm:$0xff]
    %v66 = vld [vmem:[#allocation2 + $0x40] sm:$0xff]
    %v67 = vld [vmem:[#allocation2 + $0x48] sm:$0xff]
    %v68 = vld [vmem:[#allocation2 + $0x50] sm:$0xff]
    %v69 = vld [vmem:[#allocation2 + $0x58] sm:$0xff]
    %v70 = vld [vmem:[#allocation2 + $0x60] sm:$0xff]
    %v71 = vld [vmem:[#allocation2 + $0x68] sm:$0xff]
    %v72 = vld [vmem:[#allocation2 + $0x70] sm:$0xff]
    %v73 = vld [vmem:[#allocation2 + $0x78] sm:$0xff]
    %v74 = vld [vmem:[#allocation2 + $0x80] sm:$0xff]
    %v75 = vld [vmem:[#allocation2 + $0x88] sm:$0xff]
    %v76 = vld [vmem:[#allocation2 + $0x90] sm:$0x1]
    %v77 = vld [vmem:[#allocation2 + $0x98] sm:$0x1]
    %v78 = vld [vmem:[#allocation2 + $0xa0] sm:$0x1]
    %v79 = vadd.f32 %v58, %v61
    %v80 = vadd.f32 %v79, %v64
    %v81 = vadd.f32 %v80, %v67
    %v82 = vadd.f32 %v81, %v70
    %v83 = vadd.f32 %v82, %v73
    %vm84 = vcmask 1040384
    %v85 = vsel %vm84, %v76, 0.0
    %v86 = vadd.f32 %v83, %v85
    %v87 = vrot.slane %v86, 4
    %v88 = vadd.f32 %v86, %v87
    %v89 = vrot.slane %v88, 2
    %v90 = vadd.f32 %v88, %v89
    %v91 = vrot.slane %v90, 1
    %v92 = vadd.f32 %v90, %v91
    %v93 = vadd.f32 %v59, %v62
    %v94 = vadd.f32 %v93, %v65
    %v95 = vadd.f32 %v94, %v68
    %v96 = vadd.f32 %v95, %v71
    %v97 = vadd.f32 %v96, %v74
    %v98 = vsel %vm84, %v77, 0.0
    %v99 = vadd.f32 %v97, %v98
    %v100 = vrot.slane %v99, 4
    %v101 = vadd.f32 %v99, %v100
    %v102 = vrot.slane %v101, 2
    %v103 = vadd.f32 %v101, %v102
    %v104 = vrot.slane %v103, 1
    %v105 = vadd.f32 %v103, %v104
    %vm106 = vcmask 392192
    %v107 = vsel %vm106, %v60, 0.0
    %v108 = vsel %vm106, %v63, 0.0
    %v109 = vadd.f32 %v107, %v108
    %v110 = vsel %vm106, %v66, 0.0
    %v111 = vadd.f32 %v109, %v110
    %v112 = vsel %vm106, %v69, 0.0
    %v113 = vadd.f32 %v111, %v112
    %v114 = vsel %vm106, %v72, 0.0
    %v115 = vadd.f32 %v113, %v114
    %v116 = vsel %vm106, %v75, 0.0
    %v117 = vadd.f32 %v115, %v116
    %vm118 = vcmask 385024
    %v119 = vsel %vm118, %v78, 0.0
    %v120 = vadd.f32 %v117, %v119
    %v121 = vrot.slane %v120, 4
    %v122 = vadd.f32 %v120, %v121
    %v123 = vrot.slane %v122, 2
    %v124 = vadd.f32 %v122, %v123
    %v125 = vrot.slane %v124, 1
    %v126 = vadd.f32 %v124, %v125
    %v127 = vmul.f32 %v92, 0.020408163
    %v128 = vmul.f32 %v105, 0.020408163
    %v129 = vmul.f32 %v126, 0.020408163
    %v130 = vsub.f32 %v58, %v127
    %v131 = vsub.f32 %v59, %v128
    %v132 = vsub.f32 %v60, %v129
    %v133 = vsub.f32 %v61, %v127
    %v134 = vsub.f32 %v62, %v128
    %v135 = vsub.f32 %v63, %v129
    %v136 = vsub.f32 %v64, %v127
    %v137 = vsub.f32 %v65, %v128
    %v138 = vsub.f32 %v66, %v129
    %v139 = vsub.f32 %v67, %v127
    %v140 = vsub.f32 %v68, %v128
    %v141 = vsub.f32 %v69, %v129
    %v142 = vsub.f32 %v70, %v127
    %v143 = vsub.f32 %v71, %v128
    %v144 = vsub.f32 %v72, %v129
    %v145 = vsub.f32 %v73, %v127
    %v146 = vsub.f32 %v74, %v128
    %v147 = vsub.f32 %v75, %v129
    %v148 = vsub.f32 %v76, %v127
    %v149 = vsub.f32 %v77, %v128
    %v150 = vsub.f32 %v78, %v129
    %v151 = vmul.f32 %v130, %v130
    %v152 = vmul.f32 %v131, %v131
    %v153 = vmul.f32 %v132, %v132
    %v154 = vmul.f32 %v133, %v133
    %v155 = vmul.f32 %v134, %v134
    %v156 = vmul.f32 %v135, %v135
    %v157 = vmul.f32 %v136, %v136
    %v158 = vmul.f32 %v137, %v137
    %v159 = vmul.f32 %v138, %v138
    %v160 = vmul.f32 %v139, %v139
    %v161 = vmul.f32 %v140, %v140
    %v162 = vmul.f32 %v141, %v141
    %v163 = vmul.f32 %v142, %v142
    %v164 = vmul.f32 %v143, %v143
    %v165 = vmul.f32 %v144, %v144
    %v166 = vmul.f32 %v145, %v145
    %v167 = vmul.f32 %v146, %v146
    %v168 = vmul.f32 %v147, %v147
    %v169 = vmul.f32 %v148, %v148
    %v170 = vmul.f32 %v149, %v149
    %v171 = vmul.f32 %v150, %v150
    %v172 = vadd.f32 %v151, %v154
    %v173 = vadd.f32 %v172, %v157
    %v174 = vadd.f32 %v173, %v160
    %v175 = vadd.f32 %v174, %v163
    %v176 = vadd.f32 %v175, %v166
    %v177 = vsel %vm84, %v169, 0.0
    %v178 = vadd.f32 %v176, %v177
    %v179 = vrot.slane %v178, 4
    %v180 = vadd.f32 %v178, %v179
    %v181 = vrot.slane %v180, 2
    %v182 = vadd.f32 %v180, %v181
    %v183 = vrot.slane %v182, 1
    %v184 = vadd.f32 %v182, %v183
    %v185 = vadd.f32 %v152, %v155
    %v186 = vadd.f32 %v185, %v158
    %v187 = vadd.f32 %v186, %v161
    %v188 = vadd.f32 %v187, %v164
    %v189 = vadd.f32 %v188, %v167
    %v190 = vsel %vm84, %v170, 0.0
    %v191 = vadd.f32 %v189, %v190
    %v192 = vrot.slane %v191, 4
    %v193 = vadd.f32 %v191, %v192
    %v194 = vrot.slane %v193, 2
    %v195 = vadd.f32 %v193, %v194
    %v196 = vrot.slane %v195, 1
    %v197 = vadd.f32 %v195, %v196
    %v198 = vsel %vm106, %v153, 0.0
    %v199 = vsel %vm106, %v156, 0.0
    %v200 = vadd.f32 %v198, %v199
    %v201 = vsel %vm106, %v159, 0.0
    %v202 = vadd.f32 %v200, %v201
    %v203 = vsel %vm106, %v162, 0.0
    %v204 = vadd.f32 %v202, %v203
    %v205 = vsel %vm106, %v165, 0.0
    %v206 = vadd.f32 %v204, %v205
    %v207 = vsel %vm106, %v168, 0.0
    %v208 = vadd.f32 %v206, %v207
    %v209 = vsel %vm118, %v171, 0.0
    %v210 = vadd.f32 %v208, %v209
    %v211 = vrot.slane %v210, 4
    %v212 = vadd.f32 %v210, %v211
    %v213 = vrot.slane %v212, 2
    %v214 = vadd.f32 %v212, %v213
    %v215 = vrot.slane %v214, 1
    %v216 = vadd.f32 %v214, %v215
    %v217 = vmul.f32 %v184, 0.020408163
    %v218 = vmul.f32 %v197, 0.020408163
    %v219 = vmul.f32 %v216, 0.020408163
    %v220 = vadd.f32 %v217, 0.001
    %v221 = vadd.f32 %v218, 0.001
    %v222 = vadd.f32 %v219, 0.001
    %v223 = vrsqrt.pop %v220
    %v224 = vmul.f32 %v223, %v220
    %v225 = vmul.f32 %v224, %v223
    %v226 = vmul.f32 0.5, %v225
    %v227 = vsub.f32 1.5, %v226
    %v228 = vmul.f32 %v223, %v227
    %vm229 = vweird.f32 %v220
    %vm230 = vweird.f32 %v223
    %vm231 = vmor %vm229, %vm230
    %v232 = vsel %vm231, %v223, %v228
    %v233 = vrsqrt.pop %v221
    %v234 = vmul.f32 %v233, %v221
    %v235 = vmul.f32 %v234, %v233
    %v236 = vmul.f32 0.5, %v235
    %v237 = vsub.f32 1.5, %v236
    %v238 = vmul.f32 %v233, %v237
    %vm239 = vweird.f32 %v221
    %vm240 = vweird.f32 %v233
    %vm241 = vmor %vm239, %vm240
    %v242 = vsel %vm241, %v233, %v238
    %v243 = vrsqrt.pop %v222
    %v244 = vmul.f32 %v243, %v222
    %v245 = vmul.f32 %v244, %v243
    %v246 = vmul.f32 0.5, %v245
    %v247 = vsub.f32 1.5, %v246
    %v248 = vmul.f32 %v243, %v247
    %vm249 = vweird.f32 %v222
    %vm250 = vweird.f32 %v243
    %vm251 = vmor %vm249, %vm250
    %v252 = vsel %vm251, %v243, %v248
    %v253 = vld [vmem:[#allocation5] sm:$0x7]
    %v257 = vrot.slane %v242, 7
    %v258 = vrot.slane %v252, 6
    %v259 = vsel %vm84, %v232, %v257
    %vm260 = vcmask 1041408
    %v261 = vsel %vm260, %v259, %v258
    %v263 = vmul.f32 %v253, %v261
    %v264 = vld [vmem:[#allocation7] sm:$0x7]
    %v266 = vperm.slane %v263, 0
    %v267 = vperm.slane %v263, 1
    %v268 = vperm.slane %v263, 2
    %v272 = vmul.f32 %v127, %v266
    %v273 = vmul.f32 %v128, %v267
    %v274 = vmul.f32 %v129, %v268
    %v278 = vrot.slane %v273, 7
    %v279 = vrot.slane %v274, 6
    %v280 = vsel %vm84, %v272, %v278
    %v281 = vsel %vm260, %v280, %v279
    %v283 = vsub.f32 %v264, %v281
    %v284 = vmul.f32 %v58, %v266
    %v285 = vmul.f32 %v59, %v267
    %v286 = vmul.f32 %v60, %v268
    %v287 = vmul.f32 %v61, %v266
    %v288 = vmul.f32 %v62, %v267
    %v289 = vmul.f32 %v63, %v268
    %v290 = vmul.f32 %v64, %v266
    %v291 = vmul.f32 %v65, %v267
    %v292 = vmul.f32 %v66, %v268
    %v293 = vmul.f32 %v67, %v266
    %v294 = vmul.f32 %v68, %v267
    %v295 = vmul.f32 %v69, %v268
    %v296 = vmul.f32 %v70, %v266
    %v297 = vmul.f32 %v71, %v267
    %v298 = vmul.f32 %v72, %v268
    %v299 = vmul.f32 %v73, %v266
    %v300 = vmul.f32 %v74, %v267
    %v301 = vmul.f32 %v75, %v268
    %v302 = vmul.f32 %v76, %v266
    %v303 = vmul.f32 %v77, %v267
    %v304 = vmul.f32 %v78, %v268
    %v306 = vperm.slane %v283, 0
    %v307 = vperm.slane %v283, 1
    %v308 = vperm.slane %v283, 2
    %v312 = vadd.f32 %v284, %v306
    %v313 = vadd.f32 %v285, %v307
    %v314 = vadd.f32 %v286, %v308
    %v315 = vadd.f32 %v287, %v306
    %v316 = vadd.f32 %v288, %v307
    %v317 = vadd.f32 %v289, %v308
    %v318 = vadd.f32 %v290, %v306
    %v319 = vadd.f32 %v291, %v307
    %v320 = vadd.f32 %v292, %v308
    %v321 = vadd.f32 %v293, %v306
    %v322 = vadd.f32 %v294, %v307
    %v323 = vadd.f32 %v295, %v308
    %v324 = vadd.f32 %v296, %v306
    %v325 = vadd.f32 %v297, %v307
    %v326 = vadd.f32 %v298, %v308
    %v327 = vadd.f32 %v299, %v306
    %v328 = vadd.f32 %v300, %v307
    %v329 = vadd.f32 %v301, %v308
    %v330 = vadd.f32 %v302, %v306
    %v331 = vadd.f32 %v303, %v307
    %v332 = vadd.f32 %v304, %v308
    %333 = vst [vmem:[#allocation8] sm:$0xff] %v312
    %334 = vst [vmem:[#allocation8 + $0x8] sm:$0xff] %v313
    %335 = vst.msk [vmem:[#allocation8 + $0x10] sm:$0xff] %vm106, %v314
    %336 = vst [vmem:[#allocation8 + $0x18] sm:$0xff] %v315
    %337 = vst [vmem:[#allocation8 + $0x20] sm:$0xff] %v316
    %338 = vst.msk [vmem:[#allocation8 + $0x28] sm:$0xff] %vm106, %v317
    %339 = vst [vmem:[#allocation8 + $0x30] sm:$0xff] %v318
    %340 = vst [vmem:[#allocation8 + $0x38] sm:$0xff] %v319
    %341 = vst.msk [vmem:[#allocation8 + $0x40] sm:$0xff] %vm106, %v320
    %342 = vst [vmem:[#allocation8 + $0x48] sm:$0xff] %v321
    %343 = vst [vmem:[#allocation8 + $0x50] sm:$0xff] %v322
    %344 = vst.msk [vmem:[#allocation8 + $0x58] sm:$0xff] %vm106, %v323
    %345 = vst [vmem:[#allocation8 + $0x60] sm:$0xff] %v324
    %346 = vst [vmem:[#allocation8 + $0x68] sm:$0xff] %v325
    %347 = vst.msk [vmem:[#allocation8 + $0x70] sm:$0xff] %vm106, %v326
    %348 = vst [vmem:[#allocation8 + $0x78] sm:$0xff] %v327
    %349 = vst [vmem:[#allocation8 + $0x80] sm:$0xff] %v328
    %350 = vst.msk [vmem:[#allocation8 + $0x88] sm:$0xff] %vm106, %v329
    %351 = vst [vmem:[#allocation8 + $0x90] sm:$0x1] %v330
    %352 = vst [vmem:[#allocation8 + $0x98] sm:$0x1] %v331
    %353 = vst.msk [vmem:[#allocation8 + $0xa0] sm:$0x1] %vm118, %v332
    // Predicated region
    $region26: #{tpu_custom_call.1} parent=1 // pred_check
      _
    $region27: #{tpu_custom_call.1} parent=1 // pred_check_branch
      %355 = sbr.rel (0) target = $region29
    $region28: #{tpu_custom_call.1} parent=1 // pred_region
      %357 = vsyncadd [#allocation4], 0
      %s358 = sshll.u32 [#allocation8], 4
      %s359 = int_to_ptr.vmem [resolvable:$true] %s358
      %s360 = sshll.u32 %s3, 4
      %s361 = int_to_ptr.hbm [resolvable:$true] %s360
      %366 = dma.vmem_to_hbm [thread:$0]  %s359, 2688, %s361, [#allocation4], 384, 384, 24
    $region29: #{tpu_custom_call.1} parent=1 // pred_fallthru
      _
    // Predicated region
    $region30: #{tpu_custom_call.1} parent=1 // pred_check
      _
    $region31: #{tpu_custom_call.1} parent=1 // pred_check_branch
      %368 = sbr.rel (0) target = $region33
    $region32: #{tpu_custom_call.1} parent=1 // pred_region
      %370 = dma.done [#allocation4], 2688
    $region33: #{tpu_custom_call.1} parent=1 // pred_fallthru
      _
    %371 = vsyncpa [#allocation3], 1
    %372 = vsyncpa [#allocation6], 1
    %373 = vsyncpa [#allocation4], 1

</llo_original>
